<compile_context>
chip_gen: v5e
topology: v5e:2x2
jax: 0.10.0
libtpu: 0.0.40
codegen_flags: <defaults>
</compile_context>

<pallas_src>
import jax
import jax.numpy as jnp
from jax.experimental import pallas as pl
from jax.experimental.pallas import tpu as pltpu

EPS = 1e-6

# Widest-first lane-width candidates; all multiples of 128 => unmasked, lane-dense vst.
_LANE_CANDIDATES = (4096, 2048, 1024, 512, 256, 128)
_SUB = 32                                # dtype-agnostic sublane multiple (f32:8, bf16:16, int8:32)
_TARGET_BLOCK_BYTES = 2 * 1024 * 1024    # ~2 MiB/block -> <=8 MiB resident (double-buffered in+out)
_MIN_PALLAS_ELEMS = 1 << 20              # below this, fused XLA elementwise wins


def _log_clamp_kernel(x_ref, o_ref):
    # Upcast so the max/log run in f32 on every generation (v5e lacks bf16 VPU/EUP).
    x = x_ref[...].astype(jnp.float32)
    y = jnp.log(jnp.maximum(x, jnp.float32(EPS)))
    o_ref[...] = y.astype(o_ref.dtype)


def _log_clamp_xla(x):
    xf = x.astype(jnp.float32)
    return jnp.log(jnp.maximum(xf, jnp.float32(EPS))).astype(x.dtype)


def log_module_forward(x, *, force_pallas=False):
    """Equivalent of log().forward(x): log(clamp(x, min=1e-6)); same shape/dtype."""
    n = x.size
    if n == 0:
        return x

    # Small inputs: let XLA fuse the elementwise op (no launch / pipeline fixed cost).
    if not force_pallas and n < _MIN_PALLAS_ELEMS:
        return _log_clamp_xla(x)

    # Widest lane width that divides the element count exactly -> copy-free 2-D view.
    lane_w = next((w for w in _LANE_CANDIDATES if n % w == 0), None)
    if lane_w is None:
        # TODO(synk): ragged tail (n % 128 != 0) is handled by the fused XLA op instead
        # of a pad+slice round-trip (which would add full extra HBM passes).
        return _log_clamp_xla(x)

    rows = n // lane_w
    elem_bytes = jnp.dtype(x.dtype).itemsize

    # Row tile: ~2 MiB per block, multiple of 32 sublanes, capped so the grid has
    # >= 2 blocks when possible (both v7x TensorCores stream DMAs).
    tile_target = max(_SUB, (_TARGET_BLOCK_BYTES // (lane_w * elem_bytes)) // _SUB * _SUB)
    if rows <= 2 * _SUB:
        tile_rows = rows                      # single full-dim block: always layout-legal
    else:
        half = (rows // 2) // _SUB * _SUB
        tile_rows = max(_SUB, min(tile_target, half))

    grid = (pl.cdiv(rows, tile_rows),)        # last block may be partial; OOB writes dropped

    x2d = x.reshape(rows, lane_w)             # contiguous reshape: no HBM copy
    out2d = pl.pallas_call(
        _log_clamp_kernel,
        out_shape=jax.ShapeDtypeStruct((rows, lane_w), x.dtype),
        grid=grid,
        in_specs=[pl.BlockSpec((tile_rows, lane_w), lambda i: (i, 0))],
        out_specs=pl.BlockSpec((tile_rows, lane_w), lambda i: (i, 0)),
        compiler_params=pltpu.CompilerParams(
            dimension_semantics=("parallel",),
        ),
    )(x2d)
    return out2d.reshape(x.shape)


if __name__ == "__main__":
    key = jax.random.PRNGKey(0)
    k1, k2 = jax.random.split(key)

    # Shape consistent with where log() sits in ShallowNet_dense (post-AvgPool): (N, 40, 1, T)
    x_small = jax.random.uniform(k1, (2, 40, 1, 64), dtype=jnp.float32,
                                 minval=-1.0, maxval=2.0)
    # Slightly larger activation to exercise the multi-block / partial-last-block path.
    x_big = jax.random.uniform(k2, (8, 40, 1, 3200), dtype=jnp.float32,
                               minval=-1.0, maxval=2.0)

    out_small = jax.block_until_ready(log_module_forward(x_small, force_pallas=True))
    out_big = jax.block_until_ready(log_module_forward(x_big, force_pallas=True))
    out_auto = jax.block_until_ready(log_module_forward(x_small))   # small-input XLA fallback

    ref_small = jnp.log(jnp.maximum(x_small, EPS))
    ref_big = jnp.log(jnp.maximum(x_big, EPS))

    assert out_small.shape == x_small.shape and out_small.dtype == x_small.dtype
    assert out_big.shape == x_big.shape and out_big.dtype == x_big.dtype
    assert jnp.allclose(out_small, ref_small, atol=1e-6, rtol=1e-6)
    assert jnp.allclose(out_big, ref_big, atol=1e-6, rtol=1e-6)
    assert jnp.allclose(out_auto, ref_small, atol=1e-6, rtol=1e-6)

    print("KERNEL_OK")
</pallas_src>

<mosaic_0001>
module attributes {stable_mosaic.version = 11 : i64} {
  func.func @_log_clamp_kernel(%arg0: i32, %arg1: memref<5x1024xf32, #tpu.memory_space<vmem>>, %arg2: memref<5x1024xf32, #tpu.memory_space<vmem>>) attributes {dimension_semantics = [#tpu.dimension_semantics<parallel>], iteration_bounds = array<i64: 1>, scalar_prefetch = 0 : i64, scratch_operands = 0 : i64, tpu.core_type = #tpu.core_type<tc>, window_params = [{transform_indices = @transform_0, window_bounds = array<i64: 5, 1024>}, {transform_indices = @transform_1, window_bounds = array<i64: 5, 1024>}]} {
    %c0 = arith.constant 0 : index
    %c0_0 = arith.constant 0 : index
    %0 = vector.load %arg1[%c0, %c0_0] : memref<5x1024xf32, #tpu.memory_space<vmem>>, vector<5x1024xf32>
    %cst = arith.constant 9.99999997E-7 : f32
    %1 = vector.broadcast %cst : f32 to vector<5x1024xf32>
    %2 = arith.maximumf %0, %1 : vector<5x1024xf32>
    %3 = math.log %2 : vector<5x1024xf32>
    %c0_1 = arith.constant 0 : index
    %c0_2 = arith.constant 0 : index
    %4 = vector.load %arg2[%c0_1, %c0_2] : memref<5x1024xf32, #tpu.memory_space<vmem>>, vector<5x1024xf32>
    tpu.vector_store %arg2[%c0_1, %c0_2], %3 {strides = array<i32>} : memref<5x1024xf32, #tpu.memory_space<vmem>>, vector<5x1024xf32>,
    return
  }
  func.func @transform_0(%arg0: i32) -> (i32, i32) {
    %c0_i32 = arith.constant 0 : i32
    %c0_i32_0 = arith.constant 0 : i32
    return %arg0, %c0_i32 : i32, i32
  }
  func.func @transform_1(%arg0: i32) -> (i32, i32) {
    %c0_i32 = arith.constant 0 : i32
    %c0_i32_0 = arith.constant 0 : i32
    return %arg0, %c0_i32 : i32, i32
  }
}

</mosaic_0001>

<llo_original>
// kernel: tpu_custom_call.1
$region0: #{tpu_custom_call.1}
  #allocation0 [shape = 'u32[]', space=smem, size = 0x4, offset = 0x4, fixed_abs, tag = 'smem constant byte address 0x4 - core index']
  #allocation1 [shape = 'u32[72,128]{1,0:T(1,128)}', space=vmem, size = 0x9000, scoped, tag = 'internal scratch']
  %s0 = inlined_call_operand.hbm [shape: f32[5,1024], index: 0, kind: input, shape index: {}]
  %s1 = inlined_call_operand.hbm [shape: f32[5,1024], index: 1, kind: output, shape index: {}]
  %s2 = sld [smem:[#allocation0]]
  $region18: #{tpu_custom_call.1} parent=0
    _
  %s4 = ssub.s32 1, %s2
  %s5 = scalar_select 0, %s4, %s2
  $region1: #{tpu_custom_call.1} parent=0
    #allocation2 [shape = 'u8[32768]{0}', space=vmem, size = 0x8000, scoped, tag = 'input window, operand 0, single buffered']
    #allocation3 [shape = 's32[1]{0}', space=sflag, size = 0x4, scoped, tag = 'scoped memory for tpu_custom_call.1']
    #allocation4 [shape = 's32[1]{0}', space=sflag, size = 0x4, scoped, tag = 'scoped memory for tpu_custom_call.1']
    #allocation5 [shape = 'u8[32768]{0}', space=vmem, size = 0x8000, scoped, tag = 'output window, operand 0, single buffered']
    %6 = vsyncpa [#allocation3], 0
    %7 = vsyncpa [#allocation4], 0
    // Predicated region
    $region2: #{tpu_custom_call.1} parent=1 // pred_check
      _
    $region3: #{tpu_custom_call.1} parent=1 // pred_check_branch
      %9 = sbr.rel (0) target = $region5
    $region4: #{tpu_custom_call.1} parent=1 // pred_region
      %11 = vsyncadd [#allocation3], 0
      %s13 = sshll.u32 %s0, 4
      %s14 = int_to_ptr.hbm [resolvable:$true] %s13
      %s15 = sshll.u32 [#allocation2], 4
      %s16 = int_to_ptr.vmem [resolvable:$true] %s15
      %18 = dma.hbm_to_vmem [thread:$0]  %s14, 1024, %s16, [#allocation3]
    $region5: #{tpu_custom_call.1} parent=1 // pred_fallthru
      _
    // Predicated region
    $region6: #{tpu_custom_call.1} parent=1 // pred_check
      _
    $region7: #{tpu_custom_call.1} parent=1 // pred_check_branch
      %20 = sbr.rel (0) target = $region9
    $region8: #{tpu_custom_call.1} parent=1 // pred_region
      %22 = dma.done [#allocation3], 1024
    $region9: #{tpu_custom_call.1} parent=1 // pred_fallthru
      _
    %v23 = vld [vmem:[#allocation2] sm:$0x1f]
    %v24 = vld [vmem:[#allocation2 + $0x8] sm:$0x1f]
    %v25 = vld [vmem:[#allocation2 + $0x10] sm:$0x1f]
    %v26 = vld [vmem:[#allocation2 + $0x18] sm:$0x1f]
    %v27 = vld [vmem:[#allocation2 + $0x20] sm:$0x1f]
    %v28 = vld [vmem:[#allocation2 + $0x28] sm:$0x1f]
    %v29 = vld [vmem:[#allocation2 + $0x30] sm:$0x1f]
    %v30 = vld [vmem:[#allocation2 + $0x38] sm:$0x1f]
    %v31 = vmax.f32 %v23, 1e-06
    %v32 = vmax.f32 %v24, 1e-06
    %v33 = vmax.f32 %v25, 1e-06
    %v34 = vmax.f32 %v26, 1e-06
    %v35 = vmax.f32 %v27, 1e-06
    %v36 = vmax.f32 %v28, 1e-06
    %v37 = vmax.f32 %v29, 1e-06
    %v38 = vmax.f32 %v30, 1e-06
    %v39 = vlog2.pop %v31
    %v40 = vmul.f32 %v39, 0.6931472
    %v41 = vlog2.pop %v32
    %v42 = vmul.f32 %v41, 0.6931472
    %v43 = vlog2.pop %v33
    %v44 = vmul.f32 %v43, 0.6931472
    %v45 = vlog2.pop %v34
    %v46 = vmul.f32 %v45, 0.6931472
    %v47 = vlog2.pop %v35
    %v48 = vmul.f32 %v47, 0.6931472
    %v49 = vlog2.pop %v36
    %v50 = vmul.f32 %v49, 0.6931472
    %v51 = vlog2.pop %v37
    %v52 = vmul.f32 %v51, 0.6931472
    %v53 = vlog2.pop %v38
    %v54 = vmul.f32 %v53, 0.6931472
    %55 = vst [vmem:[#allocation5] sm:$0x1f] %v40
    %56 = vst [vmem:[#allocation5 + $0x8] sm:$0x1f] %v42
    %57 = vst [vmem:[#allocation5 + $0x10] sm:$0x1f] %v44
    %58 = vst [vmem:[#allocation5 + $0x18] sm:$0x1f] %v46
    %59 = vst [vmem:[#allocation5 + $0x20] sm:$0x1f] %v48
    %60 = vst [vmem:[#allocation5 + $0x28] sm:$0x1f] %v50
    %61 = vst [vmem:[#allocation5 + $0x30] sm:$0x1f] %v52
    %62 = vst [vmem:[#allocation5 + $0x38] sm:$0x1f] %v54
    // Predicated region
    $region10: #{tpu_custom_call.1} parent=1 // pred_check
      _
    $region11: #{tpu_custom_call.1} parent=1 // pred_check_branch
      %64 = sbr.rel (0) target = $region13
    $region12: #{tpu_custom_call.1} parent=1 // pred_region
      %66 = vsyncadd [#allocation4], 0
      %s68 = sshll.u32 [#allocation5], 4
      %s69 = int_to_ptr.vmem [resolvable:$true] %s68
      %s70 = sshll.u32 %s1, 4
      %s71 = int_to_ptr.hbm [resolvable:$true] %s70
      %73 = dma.vmem_to_hbm [thread:$0]  %s69, 1024, %s71, [#allocation4]
    $region13: #{tpu_custom_call.1} parent=1 // pred_fallthru
      _
    // Predicated region
    $region14: #{tpu_custom_call.1} parent=1 // pred_check
      _
    $region15: #{tpu_custom_call.1} parent=1 // pred_check_branch
      %75 = sbr.rel (0) target = $region17
    $region16: #{tpu_custom_call.1} parent=1 // pred_region
      %77 = dma.done [#allocation4], 1024
    $region17: #{tpu_custom_call.1} parent=1 // pred_fallthru
      _
    %78 = vsyncpa [#allocation3], 1
    %79 = vsyncpa [#allocation4], 1

</llo_original>
